<compile_context>
chip_gen: v7x
topology: tpu7x:2x2x1
jax: 0.10.0
libtpu: 0.0.40
codegen_flags: <defaults>
</compile_context>

<pallas_src>
import functools

import jax
import jax.numpy as jnp
from jax import lax
from jax.experimental import pallas as pl
from jax.experimental.pallas import tpu as pltpu


def _dropout_and_store(vals_f32, o_ref, seed_ref, *, dropout_p, apply_dropout):
    """Inverted dropout on a (tm, ninp_pad) f32 block + single store to o_ref."""
    out_dtype = o_ref.dtype
    if not apply_dropout:
        o_ref[...] = vals_f32.astype(out_dtype)
        return

    tm, ninp_pad = o_ref.shape
    base = (pl.program_id(0) * tm).astype(jnp.uint32)
    rows = lax.broadcasted_iota(jnp.int32, (tm, ninp_pad), 0).astype(jnp.uint32)
    cols = lax.broadcasted_iota(jnp.int32, (tm, ninp_pad), 1).astype(jnp.uint32)
    elem = (base + rows) * jnp.uint32(ninp_pad) + cols

    # Counter-based hash (murmur3 fmix32): one uniform uint32 per element,
    # deterministic in (seed, global element position).
    # TODO(synk): on v5e hardware pltpu.prng_random_bits would replace these
    # ~10 VALU ops/element; kept portable since the MXU gather dominates.
    seed_u = seed_ref[0].astype(jnp.uint32)
    x = elem + seed_u * jnp.uint32(0x9E3779B9)
    x = x ^ (x >> 16)
    x = x * jnp.uint32(0x85EBCA6B)
    x = x ^ (x >> 13)
    x = x * jnp.uint32(0xC2B2AE35)
    x = x ^ (x >> 16)

    threshold = jnp.uint32(min(int(round(dropout_p * (2 ** 32))), (2 ** 32) - 1))
    keep = x >= threshold                      # keep with prob (1 - p)

    # Scale / select in the output dtype (bf16-native VALU on v6e/v7x).
    scale = jnp.asarray(1.0 / (1.0 - dropout_p), out_dtype)
    vals = vals_f32.astype(out_dtype) * scale
    o_ref[...] = jnp.where(keep, vals, jnp.asarray(0.0, out_dtype))


def _embedding_dropout_kernel(seed_ref, ids_ref, w_ref, o_ref, *acc,
                              tv, nv, dropout_p, apply_dropout):
    """One grid step: gather a (tm, ninp_pad) block via a one-hot MXU matmul.

    seed_ref: (1,) int32 dropout seed in SMEM (scalar prefetch).
    ids_ref : (tm, 1) int32 token ids for this token block (VMEM).
    w_ref   : (tv, ninp_pad) vocabulary tile (full table when nv == 1).
    o_ref   : (tm, ninp_pad) output block.
    acc     : optional (tm, ninp_pad) f32 scratch accumulator (only nv > 1).
    """
    tm = o_ref.shape[0]
    ids = ids_ref[...]                                       # (tm, 1) int32

    if nv == 1:
        # Resident table: one matmul, dropout, single store to o_ref.
        col = lax.broadcasted_iota(jnp.int32, (tm, tv), 1)
        one_hot = (col == ids).astype(w_ref.dtype)
        vals = jnp.dot(one_hot, w_ref[...], preferred_element_type=jnp.float32)
        _dropout_and_store(vals, o_ref, seed_ref,
                           dropout_p=dropout_p, apply_dropout=apply_dropout)
    else:
        # Streamed table: accumulate partial one-hot matmuls over vocab tiles.
        acc_ref = acc[0]
        kv = pl.program_id(1)

        @pl.when(kv == 0)
        def _():
            acc_ref[...] = jnp.zeros_like(acc_ref)

        col = lax.broadcasted_iota(jnp.int32, (tm, tv), 1) + kv * tv
        one_hot = (col == ids).astype(w_ref.dtype)
        acc_ref[...] += jnp.dot(one_hot, w_ref[...],
                                preferred_element_type=jnp.float32)

        @pl.when(kv == nv - 1)
        def _():
            _dropout_and_store(acc_ref[...], o_ref, seed_ref,
                               dropout_p=dropout_p, apply_dropout=apply_dropout)


def embedding_table_forward(indices, weight, *, dropout_p=0.5, training=True,
                            seed=0):
    """Forward of EmbeddingTable: drop(encoder(input))."""
    weight = jnp.asarray(weight)
    ntoken, ninp = weight.shape
    indices = jnp.asarray(indices)
    flat_idx = indices.reshape(-1).astype(jnp.int32)
    n = int(flat_idx.shape[0])
    out_shape = tuple(indices.shape) + (ninp,)

    dropout_p = float(dropout_p)
    if not 0.0 <= dropout_p <= 1.0:
        raise ValueError(f"dropout_p must be in [0, 1], got {dropout_p}")
    apply_dropout = bool(training) and dropout_p > 0.0
    if n == 0:
        return jnp.zeros(out_shape, weight.dtype)
    if apply_dropout and dropout_p >= 1.0:
        # nn.Dropout(p=1.0) in training mode zeroes everything (avoid inf scale).
        return jnp.zeros(out_shape, weight.dtype)

    itemsize = jnp.dtype(weight.dtype).itemsize

    # ---- chip-derived VMEM budget (per TensorCore) --------------------------
    try:
        vmem_cap = int(pltpu.get_tpu_info().vmem_capacity_bytes)
    except Exception:
        vmem_cap = 64 << 20                 # conservative (v7x per-TC) default
    budget = (vmem_cap * 3) // 4            # ~96 MiB v5e/v6e, ~48 MiB v7x

    # ---- lane-dense embedding dim, token-axis blocking ----------------------
    ninp_pad = ((ninp + 127) // 128) * 128
    tm = 512 if n >= 512 else max(8, ((n + 7) // 8) * 8)
    # Shrink tm if the output / accumulator tiles alone would eat the budget.
    while tm > 8 and (2 * tm * ninp_pad * itemsize
                      + tm * ninp_pad * 4) > budget // 2:
        tm = max(8, ((tm // 2) // 8) * 8)
    num_blocks = pl.cdiv(n, tm)
    n_pad = num_blocks * tm

    # ---- vocab tiling: resident table if it fits, else stream + accumulate --
    ntoken_r8 = ((ntoken + 7) // 8) * 8
    fixed = 2 * tm * ninp_pad * itemsize + 2 * tm * 128 * 4 + (1 << 20)
    avail = max(budget - fixed, 1 << 20)
    # TODO(synk): pipeline_mode=pl.Buffered(1) on the table BlockSpec would
    # single-buffer the invariant resident table and double this threshold.
    if 2 * ntoken_r8 * ninp_pad * itemsize <= avail:
        tv = ntoken_r8
    else:
        avail_tbl = max(avail - tm * ninp_pad * 4, 1 << 20)   # minus f32 acc
        tv = max(8, ((avail_tbl // (2 * ninp_pad * itemsize)) // 8) * 8)
        tv = min(tv, ntoken_r8)
    num_vblocks = pl.cdiv(ntoken, tv)
    ntoken_pad = num_vblocks * tv

    # ---- pad operands: padded weight rows/cols are zero; padded ids are -1,
    # so they match no one-hot column and contribute nothing. ----------------
    if (ntoken_pad, ninp_pad) != (ntoken, ninp):
        weight_p = jnp.pad(weight, ((0, ntoken_pad - ntoken),
                                    (0, ninp_pad - ninp)))
    else:
        weight_p = weight
    if n_pad != n:
        flat_idx = jnp.pad(flat_idx, (0, n_pad - n), constant_values=-1)
    ids2d = flat_idx.reshape(n_pad, 1)
    seed_arr = jnp.asarray([seed], dtype=jnp.int32)

    kernel = functools.partial(
        _embedding_dropout_kernel,
        tv=tv, nv=num_vblocks,
        dropout_p=dropout_p, apply_dropout=apply_dropout)

    scratch_shapes = []
    if num_vblocks > 1:
        scratch_shapes.append(pltpu.VMEM((tm, ninp_pad), jnp.float32))

    usage = (2 * tv * ninp_pad * itemsize            # table tiles (double buf)
             + 2 * tm * ninp_pad * itemsize          # output tiles
             + 2 * tm * 128 * 4                      # id tiles (lane padded)
             + (tm * ninp_pad * 4 if num_vblocks > 1 else 0))
    vmem_limit = int(min((vmem_cap * 9) // 10, max(2 * usage, 16 << 20)))

    table_reads = 1 if num_vblocks == 1 else num_blocks
    cost = pl.CostEstimate(
        flops=2 * n_pad * ntoken_pad * ninp_pad,     # one-hot matmul gather
        transcendentals=0,
        bytes_accessed=int(table_reads * ntoken_pad * ninp_pad * itemsize
                           + n_pad * 4 + n_pad * ninp_pad * itemsize),
    )

    out_flat = pl.pallas_call(
        kernel,
        out_shape=jax.ShapeDtypeStruct((n_pad, ninp_pad), weight.dtype),
        grid_spec=pltpu.PrefetchScalarGridSpec(
            num_scalar_prefetch=1,                   # dropout seed -> SMEM
            grid=(num_blocks, num_vblocks),
            in_specs=[
                pl.BlockSpec((tm, 1), lambda i, kv, s: (i, 0)),          # ids
                pl.BlockSpec((tv, ninp_pad), lambda i, kv, s: (kv, 0)),  # table
            ],
            out_specs=pl.BlockSpec((tm, ninp_pad), lambda i, kv, s: (i, 0)),
            scratch_shapes=scratch_shapes,
        ),
        compiler_params=pltpu.CompilerParams(
            # Token blocks are independent -> megacore; vocab axis is the
            # reduction (innermost, "arbitrary").  On v7x the resident table
            # is duplicated per TensorCore; `budget` is per-TC VMEM.
            dimension_semantics=("parallel", "arbitrary"),
            vmem_limit_bytes=vmem_limit,
        ),
        cost_estimate=cost,
    )(seed_arr, ids2d, weight_p)

    out = out_flat[:n, :ninp]
    return out.reshape(out_shape)


if __name__ == "__main__":
    # Small shapes consistent with the module: ntoken vocab, ninp embed dim,
    # input of token ids shaped (seq=8, batch=2) as in the RNN language model.
    ntoken, ninp, dropout_p = 64, 128, 0.5
    seq, batch = 8, 2

    key = jax.random.PRNGKey(0)
    k_w, k_idx = jax.random.split(key)

    # encoder.weight.data.uniform_(-0.1, 0.1)
    weight = jax.random.uniform(
        k_w, (ntoken, ninp), dtype=jnp.float32, minval=-0.1, maxval=0.1)
    indices = jax.random.randint(k_idx, (seq, batch), 0, ntoken, dtype=jnp.int32)

    # Training mode: embedding lookup + inverted dropout.
    out = embedding_table_forward(
        indices, weight, dropout_p=dropout_p, training=True, seed=1234)
    out = jax.block_until_ready(out)

    assert out.shape == (seq, batch, ninp), out.shape
    assert out.dtype == jnp.float32
    assert bool(jnp.all(jnp.isfinite(out)))

    ref = weight[indices]
    # Every element is either dropped (0) or scaled by 1/(1-p).
    scaled = ref * (1.0 / (1.0 - dropout_p))
    assert bool(jnp.all((out == 0.0) | jnp.isclose(out, scaled, atol=1e-6)))
    keep_frac = float(jnp.mean((out != 0.0).astype(jnp.float32)))
    assert 0.3 < keep_frac < 0.7, keep_frac

    # Eval mode (dropout disabled) must exactly match the pure-JAX gather.
    out_eval = jax.block_until_ready(
        embedding_table_forward(indices, weight,
                                dropout_p=dropout_p, training=False))
    assert bool(jnp.allclose(out_eval, ref, atol=1e-6, rtol=1e-6))

    print("KERNEL_OK")
</pallas_src>

<mosaic_0001>
module attributes {stable_mosaic.version = 11 : i64} {
  func.func @_embedding_dropout_kernel(%arg0: i32, %arg1: i32, %arg2: memref<1xi32, #tpu.memory_space<smem>>, %arg3: memref<16x1xi32, #tpu.memory_space<vmem>>, %arg4: memref<64x128xf32, #tpu.memory_space<vmem>>, %arg5: memref<16x128xf32, #tpu.memory_space<vmem>>) attributes {dimension_semantics = [#tpu.dimension_semantics<parallel>, #tpu.dimension_semantics<arbitrary>], iteration_bounds = array<i64: 1, 1>, scalar_prefetch = 1 : i64, scratch_operands = 0 : i64, tpu.core_type = #tpu.core_type<tc>, window_params = [{transform_indices = @transform_0, window_bounds = array<i64: 16, 1>}, {transform_indices = @transform_1, window_bounds = array<i64: 64, 128>}, {transform_indices = @transform_2, window_bounds = array<i64: 16, 128>}]} {
    %c0 = arith.constant 0 : index
    %c0_0 = arith.constant 0 : index
    %0 = vector.load %arg3[%c0, %c0_0] : memref<16x1xi32, #tpu.memory_space<vmem>>, vector<16x1xi32>
    %1 = tpu.iota {dimensions = array<i32: 1>} : vector<16x64xi32>
    %2 = vector.broadcast %0 : vector<16x1xi32> to vector<16x64xi32>
    %3 = arith.cmpi eq, %1, %2 : vector<16x64xi32>
    %4 = arith.extui %3 : vector<16x64xi1> to vector<16x64xi32>
    %5 = arith.sitofp %4 : vector<16x64xi32> to vector<16x64xf32>
    %c0_1 = arith.constant 0 : index
    %c0_2 = arith.constant 0 : index
    %6 = vector.load %arg4[%c0_1, %c0_2] : memref<64x128xf32, #tpu.memory_space<vmem>>, vector<64x128xf32>
    %cst = arith.constant dense<0.000000e+00> : vector<16x128xf32>
    %7 = tpu.matmul %5, %6, %cst {dimension_numbers = #tpu.dot_dimension_numbers<[1], [0], [0], [1], [0, 0, 1, 1], [], []>} : vector<16x64xf32>, vector<64x128xf32>, vector<16x128xf32> -> vector<16x128xf32>
    %c16_i32 = arith.constant 16 : i32
    %8 = arith.muli %arg0, %c16_i32 : i32
    %9 = tpu.iota {dimensions = array<i32: 0>} : vector<16x128xi32>
    %10 = tpu.iota {dimensions = array<i32: 1>} : vector<16x128xi32>
    %11 = vector.broadcast %8 : i32 to vector<16x128xi32>
    %12 = arith.addi %11, %9 : vector<16x128xi32>
    %c128_i32 = arith.constant 128 : i32
    %13 = vector.broadcast %c128_i32 : i32 to vector<16x128xi32>
    %14 = arith.muli %12, %13 : vector<16x128xi32>
    %15 = arith.addi %14, %10 : vector<16x128xi32>
    %c0_3 = arith.constant 0 : index
    %16 = memref.load %arg2[%c0_3] : memref<1xi32, #tpu.memory_space<smem>>
    %c-1640531527_i32 = arith.constant -1640531527 : i32
    %17 = arith.muli %16, %c-1640531527_i32 : i32
    %18 = vector.broadcast %17 : i32 to vector<16x128xi32>
    %19 = arith.addi %15, %18 : vector<16x128xi32>
    %c16_i32_4 = arith.constant 16 : i32
    %20 = vector.broadcast %c16_i32_4 : i32 to vector<16x128xi32>
    %21 = arith.shrui %19, %20 : vector<16x128xi32>
    %22 = arith.xori %19, %21 : vector<16x128xi32>
    %c-2048144789_i32 = arith.constant -2048144789 : i32
    %23 = vector.broadcast %c-2048144789_i32 : i32 to vector<16x128xi32>
    %24 = arith.muli %22, %23 : vector<16x128xi32>
    %c13_i32 = arith.constant 13 : i32
    %25 = vector.broadcast %c13_i32 : i32 to vector<16x128xi32>
    %26 = arith.shrui %24, %25 : vector<16x128xi32>
    %27 = arith.xori %24, %26 : vector<16x128xi32>
    %c-1028477387_i32 = arith.constant -1028477387 : i32
    %28 = vector.broadcast %c-1028477387_i32 : i32 to vector<16x128xi32>
    %29 = arith.muli %27, %28 : vector<16x128xi32>
    %c16_i32_5 = arith.constant 16 : i32
    %30 = vector.broadcast %c16_i32_5 : i32 to vector<16x128xi32>
    %31 = arith.shrui %29, %30 : vector<16x128xi32>
    %32 = arith.xori %29, %31 : vector<16x128xi32>
    %c-2147483648_i32 = arith.constant -2147483648 : i32
    %33 = vector.broadcast %c-2147483648_i32 : i32 to vector<16x128xi32>
    %34 = arith.cmpi uge, %32, %33 : vector<16x128xi32>
    %cst_6 = arith.constant 2.000000e+00 : f32
    %35 = vector.broadcast %cst_6 : f32 to vector<16x128xf32>
    %36 = arith.mulf %7, %35 : vector<16x128xf32>
    %cst_7 = arith.constant 0.000000e+00 : f32
    %37 = vector.broadcast %cst_7 : f32 to vector<16x128xf32>
    %38 = arith.select %34, %36, %37 : vector<16x128xi1>, vector<16x128xf32>
    %c0_8 = arith.constant 0 : index
    %c0_9 = arith.constant 0 : index
    %39 = vector.load %arg5[%c0_8, %c0_9] : memref<16x128xf32, #tpu.memory_space<vmem>>, vector<16x128xf32>
    tpu.vector_store %arg5[%c0_8, %c0_9], %38 {strides = array<i32>} : memref<16x128xf32, #tpu.memory_space<vmem>>, vector<16x128xf32>,
    return
  }
  func.func @transform_0(%arg0: i32, %arg1: i32, %arg2: memref<1xi32, #tpu.memory_space<smem>>) -> (i32, i32) {
    %c0_i32 = arith.constant 0 : i32
    %c0_i32_0 = arith.constant 0 : i32
    return %arg0, %c0_i32 : i32, i32
  }
  func.func @transform_1(%arg0: i32, %arg1: i32, %arg2: memref<1xi32, #tpu.memory_space<smem>>) -> (i32, i32) {
    %c0_i32 = arith.constant 0 : i32
    %c0_i32_0 = arith.constant 0 : i32
    return %arg1, %c0_i32 : i32, i32
  }
  func.func @transform_2(%arg0: i32, %arg1: i32, %arg2: memref<1xi32, #tpu.memory_space<smem>>) -> (i32, i32) {
    %c0_i32 = arith.constant 0 : i32
    %c0_i32_0 = arith.constant 0 : i32
    return %arg0, %c0_i32 : i32, i32
  }
}

</mosaic_0001>

<llo_original>
// kernel: tpu_custom_call.1
$region0: #{tpu_custom_call.1}
  #allocation0 [shape = 'u32[]', space=smem, size = 0x4, offset = 0x4, fixed_abs, tag = 'smem constant byte address 0x4 - core index']
  #allocation1 [shape = 'u32[144,128]{1,0:T(1,128)}', space=vmem, size = 0x12000, scoped, tag = 'internal scratch']
  #allocation2 [shape = 's32[1]{0}', space=sflag, size = 0x4, scoped, tag = 'scoped memory for tpu_custom_call.1']
  #allocation3 [shape = 's32[1]{0:T(128)S(6)}', space=smem, size = 0x200, scoped, tag = 'prefetched SMEM operand 0']
  %s0 = inlined_call_operand.<no memory space> [shape: s32[1], index: 0, kind: input, shape index: {}]
  %s1 = inlined_call_operand.vmem [shape: s32[16,1], index: 1, kind: input, shape index: {}]
  %s2 = inlined_call_operand.hbm [shape: f32[64,128], index: 2, kind: input, shape index: {}]
  %s3 = inlined_call_operand.hbm [shape: f32[16,128], index: 3, kind: output, shape index: {}]
  %s4 = sld [smem:[#allocation0]]
  $region22: #{tpu_custom_call.1} parent=0
    _
  %s6 = ssub.s32 1, %s4
  %s7 = scalar_select 0, %s6, %s4
  %8 = sst [smem:[#allocation3]] %s0
  $region1: #{tpu_custom_call.1} parent=0
    #allocation4 [shape = 'u8[32768]{0}', space=vmem, size = 0x8000, scoped, tag = 'input window, operand 2, single buffered']
    #allocation5 [shape = 's32[1]{0}', space=sflag, size = 0x4, scoped, tag = 'scoped memory for tpu_custom_call.1']
    #allocation6 [shape = 's32[1]{0}', space=sflag, size = 0x4, scoped, tag = 'scoped memory for tpu_custom_call.1']
    #allocation7 [shape = 'u8[8192]{0}', space=vmem, size = 0x2000, scoped, tag = 'output window, operand 0, single buffered']
    %9 = vsyncpa [#allocation5], 0
    %10 = vsyncpa [#allocation6], 0
    // Predicated region
    $region2: #{tpu_custom_call.1} parent=1 // pred_check
      _
    $region3: #{tpu_custom_call.1} parent=1 // pred_check_branch
      %12 = sbr.rel (0) target = $region5
    $region4: #{tpu_custom_call.1} parent=1 // pred_region
      _
    $region5: #{tpu_custom_call.1} parent=1 // pred_fallthru
      _
    // Predicated region
    $region6: #{tpu_custom_call.1} parent=1 // pred_check
      _
    $region7: #{tpu_custom_call.1} parent=1 // pred_check_branch
      %14 = sbr.rel (0) target = $region9
    $region8: #{tpu_custom_call.1} parent=1 // pred_region
      %s16 = ssub.s32 1024, 1024
      %17 = vsyncadd [#allocation5], %s16
      %s18 = sshll.u32 [#allocation4], 4
      %s19 = int_to_ptr.vmem [resolvable:$true] %s18
      %24 = dma.hbm_to_vmem [thread:$0]  %s2, 1024, %s19, [#allocation5], 128, 128, 8
    $region9: #{tpu_custom_call.1} parent=1 // pred_fallthru
      _
    // Predicated region
    $region10: #{tpu_custom_call.1} parent=1 // pred_check
      _
    $region11: #{tpu_custom_call.1} parent=1 // pred_check_branch
      %26 = sbr.rel (0) target = $region13
    $region12: #{tpu_custom_call.1} parent=1 // pred_region
      %27 = dma.done [#allocation5], 1024
    $region13: #{tpu_custom_call.1} parent=1 // pred_fallthru
      _
    %v28 = vld [vmem:[%s1] sm:$0xff]
    %v29 = vld [vmem:[%s1 + $0x8] sm:$0xff]
    %v30 = vlaneseq
    %v31 = vand.u32 %v30, 127
    %32 = vset.pattern.permute.xlu0 0
    %33 = vperm.xlu0 %32, %v28
    %v34 = vpop.permute.xlu0 %33
    %35 = vset.pattern.permute.xlu0 0
    %36 = vperm.xlu0 %35, %v29
    %v37 = vpop.permute.xlu0 %36
    %vm38 = vcmp.eq.s32.totalorder %v31, %v34
    %vm39 = vcmp.eq.s32.totalorder %v31, %v37
    %v40 = vsel %vm38, 1, 0
    %v41 = vsel %vm39, 1, 0
    %v42 = vcvt.s32.f32 %v40
    %v43 = vcvt.s32.f32 %v41
    %v44 = vld [vmem:[#allocation4] sm:$0xff]
    %v45 = vld [vmem:[#allocation4 + $0x8] sm:$0xff]
    %v46 = vld [vmem:[#allocation4 + $0x10] sm:$0xff]
    %v47 = vld [vmem:[#allocation4 + $0x18] sm:$0xff]
    %v48 = vld [vmem:[#allocation4 + $0x20] sm:$0xff]
    %v49 = vld [vmem:[#allocation4 + $0x28] sm:$0xff]
    %v50 = vld [vmem:[#allocation4 + $0x30] sm:$0xff]
    %v51 = vld [vmem:[#allocation4 + $0x38] sm:$0xff]
    %vm52 = vcmask 523264
    %v54 = vsel %vm52, %v42, 0
    %v57 = vsel %vm52, %v43, 0
    %59 = vmatprep.subr.mxu0 0.0
    %60 = vmatpush1.msra.mxu0 %v44
    %61 = vmatprep.subr.mxu0 0.0
    %62 = vmatpush1.msra.mxu0 %v45
    %63 = vmatprep.subr.mxu0 0.0
    %64 = vmatpush1.msra.mxu0 %v46
    %65 = vmatprep.subr.mxu0 0.0
    %66 = vmatpush1.msra.mxu0 %v47
    %67 = vmatprep.subr.mxu0 0.0
    %68 = vmatpush1.msra.mxu0 %v48
    %69 = vmatprep.subr.mxu0 0.0
    %70 = vmatpush1.msra.mxu0 %v49
    %71 = vmatprep.subr.mxu0 0.0
    %72 = vmatpush1.msra.mxu0 %v50
    %73 = vmatprep.subr.mxu0 0.0
    %74 = vmatpush1.msra.mxu0 %v51
    %75 = vmatprep.subr.mxu0 0.0
    %76 = vmatpush1.msra.mxu0 0.0
    %77 = vmatprep.subr.mxu0 0.0
    %78 = vmatpush1.msra.mxu0 0.0
    %79 = vmatprep.subr.mxu0 0.0
    %80 = vmatpush1.msra.mxu0 0.0
    %81 = vmatprep.subr.mxu0 0.0
    %82 = vmatpush1.msra.mxu0 0.0
    %83 = vmatprep.subr.mxu0 0.0
    %84 = vmatpush1.msra.mxu0 0.0
    %85 = vmatprep.subr.mxu0 0.0
    %86 = vmatpush1.msra.mxu0 0.0
    %87 = vmatprep.subr.mxu0 0.0
    %88 = vmatpush1.msra.mxu0 0.0
    %89 = vmatprep.subr.mxu0 0.0
    %90 = vmatpush1.msra.mxu0 0.0
    %91 = vmatprep.subr.mxu0 0.0
    %92 = vmatpush1.msra.mxu0 0.0
    %93 = vmatprep.subr.mxu0 0.0
    %94 = vmatpush1.msra.mxu0 0.0
    %95 = vmatprep.subr.mxu0 0.0
    %96 = vmatpush1.msra.mxu0 0.0
    %97 = vmatprep.subr.mxu0 0.0
    %98 = vmatpush1.msra.mxu0 0.0
    %99 = vmatprep.subr.mxu0 0.0
    %100 = vmatpush1.msra.mxu0 0.0
    %101 = vmatprep.subr.mxu0 0.0
    %102 = vmatpush1.msra.mxu0 0.0
    %103 = vmatprep.subr.mxu0 0.0
    %104 = vmatpush1.msra.mxu0 0.0
    %105 = vmatprep.subr.mxu0 0.0
    %106 = vmatpush1.msra.mxu0 0.0
    %107 = vmatprep.subr.mxu0 0.0
    %108 = vmatpush1.msra.mxu0 0.0
    %109 = vmatprep.subr.mxu0 0.0
    %110 = vmatpush1.msra.mxu0 0.0
    %111 = vmatprep.subr.mxu0 0.0
    %112 = vmatpush1.msra.mxu0 0.0
    %113 = vmatprep.subr.mxu0 0.0
    %114 = vmatpush1.msra.mxu0 0.0
    %115 = vmatprep.subr.mxu0 0.0
    %116 = vmatpush1.msra.mxu0 0.0
    %117 = vmatprep.subr.mxu0 0.0
    %118 = vmatpush1.msra.mxu0 0.0
    %119 = vmatprep.subr.mxu0 0.0
    %120 = vmatpush1.msra.mxu0 0.0
    %121 = vmatprep.subr.mxu0 0.0
    %122 = vmatpush1.msra.mxu0 0.0
    %123 = vmatprep.mubr.f32.mxu0 0.0
    %124 = vmatmul.mubr.f32.gmra.mrb[0].mxu0 %v54
    %v125 = vpop.f32.mrb[0].mxu0
    %v126 = vadd.f32 0.0, %v125
    %v127 = vpop.f32.mrb[0].mxu0
    %128 = vmatprep.mubr.f32.mxu0 0.0
    %129 = vmatmul.mubr.f32.gmra.mrb[0].mxu0 %v57
    %v130 = vpop.f32.mrb[0].mxu0
    %v131 = vadd.f32 0.0, %v130
    %v132 = vpop.f32.mrb[0].mxu0
    %133 = vdwg.mxu0
    %s134 = smul.u32 0, 16
    %v135 = vlaneseq
    %v136 = vshrl.u32 %v135, 7
    %v137 = vadd.s32 %v136, 8
    %v138 = vstv %s134
    %v139 = vadd.s32 %v138, %v136
    %v140 = vadd.s32 %v138, %v137
    %v141 = vmul.u32 %v139, 128
    %v142 = vmul.u32 %v140, 128
    %v143 = vadd.s32 %v141, %v31
    %v144 = vadd.s32 %v142, %v31
    %s145 = sld [smem:[#allocation3]]
    %s146 = smul.u32 %s145, 2654435769
    %v147 = vstv %s146
    %v148 = vadd.s32 %v143, %v147
    %v149 = vadd.s32 %v144, %v147
    %v150 = vshrl.u32 %v148, 16
    %v151 = vshrl.u32 %v149, 16
    %v152 = vxor.u32 %v148, %v150
    %v153 = vxor.u32 %v149, %v151
    %v154 = vmul.u32 %v152, 2246822507
    %v155 = vmul.u32 %v153, 2246822507
    %v156 = vshrl.u32 %v154, 13
    %v157 = vshrl.u32 %v155, 13
    %v158 = vxor.u32 %v154, %v156
    %v159 = vxor.u32 %v155, %v157
    %v160 = vmul.u32 %v158, 3266489909
    %v161 = vmul.u32 %v159, 3266489909
    %v162 = vshrl.u32 %v160, 16
    %v163 = vshrl.u32 %v161, 16
    %v164 = vxor.u32 %v160, %v162
    %v165 = vxor.u32 %v161, %v163
    %vm166 = vcmp.ge.u32.totalorder %v164, 2147483648
    %vm167 = vcmp.ge.u32.totalorder %v165, 2147483648
    %v168 = vmul.f32 %v126, 2.0
    %v169 = vmul.f32 %v131, 2.0
    %v170 = vsel %vm166, %v168, 0.0
    %v171 = vsel %vm167, %v169, 0.0
    %172 = vst [vmem:[#allocation7] sm:$0xff] %v170
    %173 = vst [vmem:[#allocation7 + $0x8] sm:$0xff] %v171
    // Predicated region
    $region14: #{tpu_custom_call.1} parent=1 // pred_check
      _
    $region15: #{tpu_custom_call.1} parent=1 // pred_check_branch
      %175 = sbr.rel (0) target = $region17
    $region16: #{tpu_custom_call.1} parent=1 // pred_region
      %s177 = ssub.s32 256, 256
      %178 = vsyncadd [#allocation6], %s177
      %s179 = sshll.u32 [#allocation7], 4
      %s180 = int_to_ptr.vmem [resolvable:$true] %s179
      %185 = dma.vmem_to_hbm [thread:$0]  %s180, 256, %s3, [#allocation6], 128, 128, 8
    $region17: #{tpu_custom_call.1} parent=1 // pred_fallthru
      _
    // Predicated region
    $region18: #{tpu_custom_call.1} parent=1 // pred_check
      _
    $region19: #{tpu_custom_call.1} parent=1 // pred_check_branch
      %187 = sbr.rel (0) target = $region21
    $region20: #{tpu_custom_call.1} parent=1 // pred_region
      %188 = dma.done [#allocation6], 256
    $region21: #{tpu_custom_call.1} parent=1 // pred_fallthru
      _
    %189 = vsyncpa [#allocation5], 1
    %190 = vsyncpa [#allocation6], 1

</llo_original>
